<compile_context>
chip_gen: v7x
topology: tpu7x:2x2x1
jax: 0.10.0
libtpu: 0.0.40
codegen_flags: <defaults>
</compile_context>

<pallas_src>
import functools
import math

import jax
import jax.numpy as jnp
from jax.experimental import pallas as pl
from jax.experimental.pallas import tpu as pltpu


_LANE = 1024                     # lane-dense last dim (multiple of 128)
_MAX_BLOCK_ROWS = 512            # 512 x 1024 f32 tile ~= 2 MiB
_VMEM_LIMIT = 32 * 1024 * 1024   # explicit cap: safe on v5e/v6e (128 MiB) and v7x (64 MiB)


def _identity_kernel(x_ref, o_ref):
    # Pure pass-through: NoQuan_bias.forward with noise_scale == 0.
    o_ref[...] = x_ref[...]


def _noise_kernel(coeff_ref, x_ref, n_ref, o_ref, *, method):
    # coeff_ref: (1,) scalar in SMEM (factor * noise_scale for 'add', noise_scale for 'mul')
    # x_ref:     (br, LANE) tile of the weight/bias in its native dtype
    # n_ref:     (br, LANE) tile of clamped standard-normal noise (f32)
    c = coeff_ref[0]
    x = x_ref[...].astype(jnp.float32)
    nz = n_ref[...]
    if method == "add":
        y = x + nz * c
    else:  # "mul"
        y = x * (nz * c + jnp.float32(1.0))
    o_ref[...] = y.astype(o_ref.dtype)


def _plan(n):
    """Pick (rows_padded, block_rows, num_blocks) for a lane-dense (rows, _LANE) slab."""
    rows = max(1, -(-n // _LANE))
    nblocks = -(-rows // _MAX_BLOCK_ROWS)
    if nblocks == 1:
        br = rows                       # block == full array -> no (8,128) constraint
    else:
        br = -(-rows // nblocks)
        br = -(-br // 8) * 8            # multiple of 8 sublanes when tiled
    rows_padded = nblocks * br
    return rows_padded, br, nblocks


def _to_slab(x, rows_padded):
    n = x.size
    flat = x.reshape(-1)
    pad = rows_padded * _LANE - n
    if pad:
        flat = jnp.pad(flat, (0, pad))
    return flat.reshape(rows_padded, _LANE)


def noquan_bias_forward(x, s, *, noise_scale=0, noise_method="add",
                        noise_range="max", noise_key=None):
    """Pallas TPU implementation of NoQuan_bias.forward (s is ignored)."""
    del s  # identity quantizer: the scale argument is unused in forward
    orig_shape = x.shape
    orig_dtype = x.dtype
    n = int(math.prod(orig_shape)) if orig_shape else 1

    rows_padded, br, nblocks = _plan(n)
    x2 = _to_slab(x, rows_padded)

    grid = (nblocks,)
    block = (br, _LANE)
    cparams = pltpu.CompilerParams(
        dimension_semantics=("parallel",),
        vmem_limit_bytes=_VMEM_LIMIT,
    )

    if noise_scale == 0:
        out2 = pl.pallas_call(
            _identity_kernel,
            out_shape=jax.ShapeDtypeStruct((rows_padded, _LANE), orig_dtype),
            grid_spec=pltpu.PrefetchScalarGridSpec(
                num_scalar_prefetch=0,
                grid=grid,
                in_specs=[pl.BlockSpec(block, lambda i: (i, 0))],
                out_specs=pl.BlockSpec(block, lambda i: (i, 0)),
            ),
            compiler_params=cparams,
        )(x2)
    else:
        xf = x.astype(jnp.float32)
        if noise_range == "max":
            factor = jnp.max(xf)
        elif noise_range == "std":
            factor = jnp.std(xf, ddof=1)          # torch .std() is unbiased
        elif noise_range == "max_min":
            factor = jnp.max(xf) - jnp.min(xf)
        elif noise_range == "maxabs_2":
            factor = 2.0 * jnp.max(jnp.abs(xf))
        else:
            raise ValueError(f"unknown noise_range {noise_range!r}")

        if noise_method == "add":
            coeff = factor * jnp.float32(noise_scale)
        elif noise_method == "mul":
            coeff = jnp.float32(noise_scale)
        else:
            raise ValueError(f"unknown noise_method {noise_method!r}")
        coeff = jnp.asarray(coeff, jnp.float32).reshape((1,))

        if noise_key is None:
            noise_key = jax.random.PRNGKey(0)
        # TODO(synk): noise is drawn with the JAX PRNG in the wrapper (torch's randn
        # stream cannot be reproduced); could be moved in-kernel via pltpu.stateful_normal.
        noise = jnp.clip(
            jax.random.normal(noise_key, (rows_padded, _LANE), dtype=jnp.float32),
            -3.0, 3.0)

        kernel = functools.partial(_noise_kernel, method=noise_method)
        out2 = pl.pallas_call(
            kernel,
            out_shape=jax.ShapeDtypeStruct((rows_padded, _LANE), orig_dtype),
            grid_spec=pltpu.PrefetchScalarGridSpec(
                num_scalar_prefetch=0,
                grid=grid,
                in_specs=[
                    pl.BlockSpec(memory_space=pltpu.MemorySpace.SMEM),   # scalar coeff
                    pl.BlockSpec(block, lambda i: (i, 0)),               # x tile
                    pl.BlockSpec(block, lambda i: (i, 0)),               # noise tile
                ],
                out_specs=pl.BlockSpec(block, lambda i: (i, 0)),
            ),
            compiler_params=cparams,
        )(coeff, x2, noise)

    return out2.reshape(-1)[:n].reshape(orig_shape)


def noquan_bias_get_int(x):
    """Mirror of NoQuan_bias.get_int: returns (x, 1)."""
    return x, 1


if __name__ == "__main__":
    key = jax.random.PRNGKey(0)
    k1, k2, k3 = jax.random.split(key, 3)

    # Bias-like vector (the module is a bias "quantizer": forward is identity).
    b = jax.random.normal(k1, (32,), dtype=jnp.float32) * 0.05
    # A 4-D tensor to exercise the padded lane-dense slab path.
    x = jax.random.normal(k2, (2, 4, 16, 16), dtype=jnp.float32)

    s = jnp.float32(1.0)  # ignored by NoQuan_bias.forward

    # Default path: noise_scale = 0 -> exact identity.
    y_b = jax.block_until_ready(noquan_bias_forward(b, s))
    y_x = jax.block_until_ready(noquan_bias_forward(x, s))
    assert y_b.shape == b.shape and y_b.dtype == b.dtype
    assert y_x.shape == x.shape and y_x.dtype == x.dtype
    assert jnp.array_equal(y_b, b)
    assert jnp.array_equal(y_x, x)

    # Dtype-matched I/O: bf16 stays bf16 (no f32 round trip through HBM).
    xb = x.astype(jnp.bfloat16)
    y_xb = jax.block_until_ready(noquan_bias_forward(xb, s))
    assert y_xb.dtype == jnp.bfloat16 and jnp.array_equal(y_xb, xb)

    # Optional noise-injection path (noise_scale != 0, method='add', range='max');
    # check exactly against a pure-JAX reference built from the same clamped draw.
    y_n = jax.block_until_ready(
        noquan_bias_forward(x, s, noise_scale=0.074, noise_method="add",
                            noise_range="max", noise_key=k3))
    rows_padded, _, _ = _plan(x.size)
    noise_slab = jnp.clip(
        jax.random.normal(k3, (rows_padded, _LANE), dtype=jnp.float32), -3.0, 3.0)
    noise_x = noise_slab.reshape(-1)[: x.size].reshape(x.shape)
    y_n_ref = x + noise_x * (jnp.max(x) * jnp.float32(0.074))
    assert jnp.allclose(y_n, y_n_ref, atol=1e-6, rtol=1e-6)

    # get_int mirror.
    gx, g1 = noquan_bias_get_int(x)
    assert gx is x and g1 == 1

    print("KERNEL_OK")
</pallas_src>

<mosaic_0001>
module attributes {stable_mosaic.version = 11 : i64} {
  func.func @_identity_kernel(%arg0: i32, %arg1: memref<1x1024xf32, #tpu.memory_space<vmem>>, %arg2: memref<1x1024xf32, #tpu.memory_space<vmem>>) attributes {dimension_semantics = [#tpu.dimension_semantics<parallel>], iteration_bounds = array<i64: 1>, scalar_prefetch = 0 : i64, scratch_operands = 0 : i64, tpu.core_type = #tpu.core_type<tc>, window_params = [{transform_indices = @transform_0, window_bounds = array<i64: 1, 1024>}, {transform_indices = @transform_1, window_bounds = array<i64: 1, 1024>}]} {
    %c0 = arith.constant 0 : index
    %c0_0 = arith.constant 0 : index
    %0 = vector.load %arg1[%c0, %c0_0] : memref<1x1024xf32, #tpu.memory_space<vmem>>, vector<1x1024xf32>
    %c0_1 = arith.constant 0 : index
    %c0_2 = arith.constant 0 : index
    %1 = vector.load %arg2[%c0_1, %c0_2] : memref<1x1024xf32, #tpu.memory_space<vmem>>, vector<1x1024xf32>
    tpu.vector_store %arg2[%c0_1, %c0_2], %0 {strides = array<i32>} : memref<1x1024xf32, #tpu.memory_space<vmem>>, vector<1x1024xf32>,
    return
  }
  func.func @transform_0(%arg0: i32) -> (i32, i32) {
    %c0_i32 = arith.constant 0 : i32
    %c0_i32_0 = arith.constant 0 : i32
    return %arg0, %c0_i32 : i32, i32
  }
  func.func @transform_1(%arg0: i32) -> (i32, i32) {
    %c0_i32 = arith.constant 0 : i32
    %c0_i32_0 = arith.constant 0 : i32
    return %arg0, %c0_i32 : i32, i32
  }
}

</mosaic_0001>

<llo_original>
// kernel: tpu_custom_call.1
$region0: #{tpu_custom_call.1}
  #allocation0 [shape = 'u32[]', space=smem, size = 0x4, offset = 0x4, fixed_abs, tag = 'smem constant byte address 0x4 - core index']
  #allocation1 [shape = 'u32[144,128]{1,0:T(1,128)}', space=vmem, size = 0x12000, scoped, tag = 'internal scratch']
  %s0 = inlined_call_operand.hbm [shape: f32[1,1024], index: 0, kind: input, shape index: {}]
  %s1 = inlined_call_operand.hbm [shape: f32[1,1024], index: 1, kind: output, shape index: {}]
  %s2 = sld [smem:[#allocation0]]
  $region18: #{tpu_custom_call.1} parent=0
    _
  %s4 = ssub.s32 1, %s2
  %s5 = scalar_select 0, %s4, %s2
  $region1: #{tpu_custom_call.1} parent=0
    #allocation2 [shape = 'u8[4096]{0}', space=vmem, size = 0x1000, scoped, tag = 'input window, operand 0, single buffered']
    #allocation3 [shape = 's32[1]{0}', space=sflag, size = 0x4, scoped, tag = 'scoped memory for tpu_custom_call.1']
    #allocation4 [shape = 's32[1]{0}', space=sflag, size = 0x4, scoped, tag = 'scoped memory for tpu_custom_call.1']
    #allocation5 [shape = 'u8[4096]{0}', space=vmem, size = 0x1000, scoped, tag = 'output window, operand 0, single buffered']
    %6 = vsyncpa [#allocation3], 0
    %7 = vsyncpa [#allocation4], 0
    // Predicated region
    $region2: #{tpu_custom_call.1} parent=1 // pred_check
      _
    $region3: #{tpu_custom_call.1} parent=1 // pred_check_branch
      %9 = sbr.rel (0) target = $region5
    $region4: #{tpu_custom_call.1} parent=1 // pred_region
      %s11 = ssub.s32 128, 128
      %12 = vsyncadd [#allocation3], %s11
      %s14 = sshll.u32 [#allocation2], 4
      %s15 = int_to_ptr.vmem [resolvable:$true] %s14
      %17 = dma.hbm_to_vmem [thread:$0]  %s0, 128, %s15, [#allocation3]
    $region5: #{tpu_custom_call.1} parent=1 // pred_fallthru
      _
    // Predicated region
    $region6: #{tpu_custom_call.1} parent=1 // pred_check
      _
    $region7: #{tpu_custom_call.1} parent=1 // pred_check_branch
      %19 = sbr.rel (0) target = $region9
    $region8: #{tpu_custom_call.1} parent=1 // pred_region
      %20 = dma.done [#allocation3], 128
    $region9: #{tpu_custom_call.1} parent=1 // pred_fallthru
      _
    %v21 = vld [vmem:[#allocation2] sm:$0xff]
    %22 = vst [vmem:[#allocation5] sm:$0xff] %v21
    // Predicated region
    $region10: #{tpu_custom_call.1} parent=1 // pred_check
      _
    $region11: #{tpu_custom_call.1} parent=1 // pred_check_branch
      %24 = sbr.rel (0) target = $region13
    $region12: #{tpu_custom_call.1} parent=1 // pred_region
      %s26 = ssub.s32 128, 128
      %27 = vsyncadd [#allocation4], %s26
      %s29 = sshll.u32 [#allocation5], 4
      %s30 = int_to_ptr.vmem [resolvable:$true] %s29
      %32 = dma.vmem_to_hbm [thread:$0]  %s30, 128, %s1, [#allocation4]
    $region13: #{tpu_custom_call.1} parent=1 // pred_fallthru
      _
    // Predicated region
    $region14: #{tpu_custom_call.1} parent=1 // pred_check
      _
    $region15: #{tpu_custom_call.1} parent=1 // pred_check_branch
      %34 = sbr.rel (0) target = $region17
    $region16: #{tpu_custom_call.1} parent=1 // pred_region
      %35 = dma.done [#allocation4], 128
    $region17: #{tpu_custom_call.1} parent=1 // pred_fallthru
      _
    %36 = vsyncpa [#allocation3], 1
    %37 = vsyncpa [#allocation4], 1

</llo_original>
